<compile_context>
chip_gen: v7x
topology: tpu7x:2x2x1
jax: 0.10.0
libtpu: 0.0.40
codegen_flags: <defaults>
</compile_context>

<pallas_src>
import functools

import jax
import jax.numpy as jnp
from jax import lax
from jax.experimental import pallas as pl
from jax.experimental.pallas import tpu as pltpu

HIDDEN_SIZES = [64, 128, 64, 32]
NUM_CLASSES = 2
BN_EPS = 1e-5
PAD = 128          # lane-dense padded feature width for hidden / output layers
DEFAULT_TB = 512   # batch tile (rows); sweep 512/1024/2048 for large batches


# --------------------------------------------------------------------------- kernel
def spotify_mlp_kernel(x_ref, w0, w1, w2, w3, w_out, c_all, out_ref):
    """Fused forward for one (TB, F) batch tile. Weights/biases resident in VMEM.

    Matmul inputs are bf16, accumulation + bias + ReLU in f32, output stored bf16.
    """
    # Layer 0: (TB, F) @ (F, 128)  -- input feature dim is NOT padded.
    h = jnp.dot(x_ref[...], w0[...], preferred_element_type=jnp.float32)
    h = jnp.maximum(h + c_all[0:1, :], 0.0)
    # Layers 1..3: (TB, 128) @ (128, 128)
    for idx, w in ((1, w1), (2, w2), (3, w3)):
        h = jnp.dot(h.astype(jnp.bfloat16), w[...],
                    preferred_element_type=jnp.float32)
        h = jnp.maximum(h + c_all[idx:idx + 1, :], 0.0)
    # Output layer (columns beyond num_classes are zero weights/bias -> zero lanes).
    logits = jnp.dot(h.astype(jnp.bfloat16), w_out[...],
                     preferred_element_type=jnp.float32) + c_all[4:5, :]
    out_ref[...] = logits.astype(out_ref.dtype)


# ----------------------------------------------------------------------- parameters
def init_params(key, input_size, hidden_sizes=HIDDEN_SIZES, num_classes=NUM_CLASSES):
    """Deterministic synthetic parameters (PyTorch-like uniform Linear init +
    synthetic BatchNorm running stats), kept un-folded for the f32 reference."""
    dims = [input_size] + list(hidden_sizes)
    params = {"hidden": [], "out_w": None, "out_b": None}
    for i in range(len(hidden_sizes)):
        fan_in, fan_out = dims[i], dims[i + 1]
        key, kw, kb, kg, kbe, km, kv = jax.random.split(key, 7)
        bound = 1.0 / jnp.sqrt(jnp.float32(fan_in))
        w = jax.random.uniform(kw, (fan_in, fan_out), jnp.float32, -bound, bound)
        b = jax.random.uniform(kb, (fan_out,), jnp.float32, -bound, bound)
        gamma = 1.0 + 0.1 * jax.random.normal(kg, (fan_out,), jnp.float32)
        beta = 0.1 * jax.random.normal(kbe, (fan_out,), jnp.float32)
        r_mean = 0.1 * jax.random.normal(km, (fan_out,), jnp.float32)
        r_var = 1.0 + 0.1 * jnp.abs(jax.random.normal(kv, (fan_out,), jnp.float32))
        scale = gamma / jnp.sqrt(r_var + BN_EPS)          # eval-mode BN scale
        shift = beta - r_mean * scale                     # eval-mode BN shift
        params["hidden"].append((w,
                                 b.reshape(1, fan_out),
                                 scale.reshape(1, fan_out),
                                 shift.reshape(1, fan_out)))
    fan_in = hidden_sizes[-1]
    key, kw, kb = jax.random.split(key, 3)
    bound = 1.0 / jnp.sqrt(jnp.float32(fan_in))
    params["out_w"] = jax.random.uniform(kw, (fan_in, num_classes), jnp.float32,
                                         -bound, bound)
    params["out_b"] = jax.random.uniform(kb, (num_classes,), jnp.float32,
                                         -bound, bound).reshape(1, num_classes)
    return params


def fold_and_pad_params(params, input_size, hidden_sizes=HIDDEN_SIZES,
                        num_classes=NUM_CLASSES, pad=PAD):
    """Fold BN(eval) scale into W / bias (in f32), zero-pad hidden dims to `pad`,
    cast weights to bf16, and stack the 5 bias rows into one (8, pad) f32 array.

    The first weight keeps its real row count (= input_size): no input padding."""
    dims = [input_size] + list(hidden_sizes)
    weights, bias_rows = [], []
    for i, (w, b, s, t) in enumerate(params["hidden"]):
        fan_in, fan_out = dims[i], dims[i + 1]
        wf = w * s                 # (fan_in, fan_out): W' = W * scale   (f32 fold)
        cf = (b * s + t)[0]        # (fan_out,):        c' = b*scale + shift
        rows = fan_in if i == 0 else pad
        wp = jnp.zeros((rows, pad), jnp.float32).at[:fan_in, :fan_out].set(wf)
        weights.append(wp.astype(jnp.bfloat16))
        bias_rows.append(jnp.zeros((pad,), jnp.float32).at[:fan_out].set(cf))
    fan_in = hidden_sizes[-1]
    w_out = jnp.zeros((pad, pad), jnp.float32).at[:fan_in, :num_classes].set(
        params["out_w"])
    weights.append(w_out.astype(jnp.bfloat16))
    bias_rows.append(jnp.zeros((pad,), jnp.float32).at[:num_classes].set(
        params["out_b"][0]))
    c_all = jnp.zeros((8, pad), jnp.float32)
    for r, row in enumerate(bias_rows):
        c_all = c_all.at[r].set(row)
    return {"weights": tuple(weights), "c_all": c_all}


# -------------------------------------------------------------------------- wrapper
@functools.partial(jax.jit, static_argnames=("num_classes", "tb"))
def spotify_forward(x, kparams, num_classes=NUM_CLASSES, tb=DEFAULT_TB):
    """Batch-tiled, lane-dense fused MLP forward. Returns (B, num_classes) f32 logits."""
    B, F = x.shape
    # Effective batch tile: multiple of 16 (bf16 sublane packing), no bigger than needed.
    tb_eff = min(tb, max(16, ((B + 15) // 16) * 16))
    n_tiles = pl.cdiv(B, tb_eff)
    Bp = n_tiles * tb_eff

    xb = x.astype(jnp.bfloat16)
    if Bp != B:
        xb = jnp.zeros((Bp, F), jnp.bfloat16).at[:B, :].set(xb)

    w0, w1, w2, w3, w_out = kparams["weights"]
    c_all = kparams["c_all"]

    x_spec = pl.BlockSpec((tb_eff, F), lambda i: (i, 0))          # streamed input
    w0_spec = pl.BlockSpec((w0.shape[0], PAD), lambda i: (0, 0))  # resident weights
    w_spec = pl.BlockSpec((PAD, PAD), lambda i: (0, 0))
    c_spec = pl.BlockSpec((8, PAD), lambda i: (0, 0))             # stacked biases
    out_spec = pl.BlockSpec((tb_eff, PAD), lambda i: (i, 0))      # lane-dense output

    out_padded = pl.pallas_call(
        spotify_mlp_kernel,
        out_shape=jax.ShapeDtypeStruct((Bp, PAD), jnp.bfloat16),
        grid=(n_tiles,),
        in_specs=[x_spec, w0_spec, w_spec, w_spec, w_spec, w_spec, c_spec],
        out_specs=out_spec,
        compiler_params=pltpu.CompilerParams(
            dimension_semantics=("parallel",)),
    )(xb, w0, w1, w2, w3, w_out, c_all)

    # Fused narrow slice inside the same jit (no extra HBM round trip).
    logits = lax.slice(out_padded, (0, 0), (B, num_classes))
    return logits.astype(jnp.float32)


# ------------------------------------------------------------------------ references
def reference_forward(x, params):
    """Pure-JAX f32 reference with identical eval-mode semantics (un-folded math)."""
    h = x.astype(jnp.float32)
    for (w, b, s, t) in params["hidden"]:
        h = jnp.maximum((h @ w + b) * s + t, 0.0)
    return h @ params["out_w"] + params["out_b"]


def reference_forward_folded(x, kparams, num_classes=NUM_CLASSES):
    """Mirrors the kernel's folded bf16-weight / f32-accumulate math exactly."""
    w0, w1, w2, w3, w_out = kparams["weights"]
    c = kparams["c_all"]
    h = x.astype(jnp.bfloat16)
    for i, w in enumerate((w0, w1, w2, w3)):
        h = jnp.maximum(
            jnp.dot(h, w, preferred_element_type=jnp.float32) + c[i:i + 1, :], 0.0)
        h = h.astype(jnp.bfloat16)
    logits = jnp.dot(h, w_out, preferred_element_type=jnp.float32) + c[4:5, :]
    return logits.astype(jnp.bfloat16)[:, :num_classes].astype(jnp.float32)


# ----------------------------------------------------------------------------- main
if __name__ == "__main__":
    batch = 8
    input_size = 16

    key = jax.random.PRNGKey(0)
    key, kx = jax.random.split(key)
    x = jax.random.normal(kx, (batch, input_size), jnp.float32)

    params = init_params(key, input_size)
    kparams = fold_and_pad_params(params, input_size)

    out = spotify_forward(x, kparams)
    out = jax.block_until_ready(out)
    assert out.shape == (batch, NUM_CLASSES), out.shape

    # Exact-path check (same bf16/f32 math as the kernel).
    ref_folded = reference_forward_folded(x, kparams)
    assert jnp.allclose(out, ref_folded, atol=1e-2, rtol=1e-2), \
        "mismatch vs bf16-matched folded reference"

    # Semantics check vs the un-folded full-f32 reference (bf16 quantization slack).
    ref_f32 = reference_forward(x, params)
    assert jnp.allclose(out, ref_f32, atol=5e-2, rtol=5e-2), \
        "mismatch vs f32 un-folded reference"

    print("KERNEL_OK")
</pallas_src>

<mosaic_0001>
module attributes {stable_mosaic.version = 11 : i64} {
  func.func @spotify_mlp_kernel(%arg0: i32, %arg1: memref<16x16xbf16, #tpu.memory_space<vmem>>, %arg2: memref<16x128xbf16, #tpu.memory_space<vmem>>, %arg3: memref<128x128xbf16, #tpu.memory_space<vmem>>, %arg4: memref<128x128xbf16, #tpu.memory_space<vmem>>, %arg5: memref<128x128xbf16, #tpu.memory_space<vmem>>, %arg6: memref<128x128xbf16, #tpu.memory_space<vmem>>, %arg7: memref<8x128xf32, #tpu.memory_space<vmem>>, %arg8: memref<16x128xbf16, #tpu.memory_space<vmem>>) attributes {dimension_semantics = [#tpu.dimension_semantics<parallel>], iteration_bounds = array<i64: 1>, scalar_prefetch = 0 : i64, scratch_operands = 0 : i64, tpu.core_type = #tpu.core_type<tc>, window_params = [{transform_indices = @transform_0, window_bounds = array<i64: 16, 16>}, {pipeline_mode = #tpu.pipeline_mode<synchronous>, transform_indices = @transform_1, window_bounds = array<i64: 16, 128>}, {pipeline_mode = #tpu.pipeline_mode<synchronous>, transform_indices = @transform_2, window_bounds = array<i64: 128, 128>}, {pipeline_mode = #tpu.pipeline_mode<synchronous>, transform_indices = @transform_3, window_bounds = array<i64: 128, 128>}, {pipeline_mode = #tpu.pipeline_mode<synchronous>, transform_indices = @transform_4, window_bounds = array<i64: 128, 128>}, {pipeline_mode = #tpu.pipeline_mode<synchronous>, transform_indices = @transform_5, window_bounds = array<i64: 128, 128>}, {pipeline_mode = #tpu.pipeline_mode<synchronous>, transform_indices = @transform_6, window_bounds = array<i64: 8, 128>}, {transform_indices = @transform_7, window_bounds = array<i64: 16, 128>}]} {
    %c0 = arith.constant 0 : index
    %c0_0 = arith.constant 0 : index
    %0 = vector.load %arg1[%c0, %c0_0] : memref<16x16xbf16, #tpu.memory_space<vmem>>, vector<16x16xbf16>
    %c0_1 = arith.constant 0 : index
    %c0_2 = arith.constant 0 : index
    %1 = vector.load %arg2[%c0_1, %c0_2] : memref<16x128xbf16, #tpu.memory_space<vmem>>, vector<16x128xbf16>
    %cst = arith.constant dense<0.000000e+00> : vector<16x128xf32>
    %2 = tpu.matmul %0, %1, %cst {dimension_numbers = #tpu.dot_dimension_numbers<[1], [0], [0], [1], [0, 0, 1, 1], [], []>} : vector<16x16xbf16>, vector<16x128xbf16>, vector<16x128xf32> -> vector<16x128xf32>
    %c0_3 = arith.constant 0 : index
    %c0_4 = arith.constant 0 : index
    %3 = vector.load %arg7[%c0_3, %c0_4] : memref<8x128xf32, #tpu.memory_space<vmem>>, vector<1x128xf32>
    %4 = vector.broadcast %3 : vector<1x128xf32> to vector<16x128xf32>
    %5 = arith.addf %2, %4 : vector<16x128xf32>
    %cst_5 = arith.constant 0.000000e+00 : f32
    %6 = vector.broadcast %cst_5 : f32 to vector<16x128xf32>
    %7 = arith.maximumf %5, %6 : vector<16x128xf32>
    %8 = arith.truncf %7 : vector<16x128xf32> to vector<16x128xbf16>
    %c0_6 = arith.constant 0 : index
    %c0_7 = arith.constant 0 : index
    %9 = vector.load %arg3[%c0_6, %c0_7] : memref<128x128xbf16, #tpu.memory_space<vmem>>, vector<128x128xbf16>
    %cst_8 = arith.constant dense<0.000000e+00> : vector<16x128xf32>
    %10 = tpu.matmul %8, %9, %cst_8 {dimension_numbers = #tpu.dot_dimension_numbers<[1], [0], [0], [1], [0, 0, 1, 1], [], []>} : vector<16x128xbf16>, vector<128x128xbf16>, vector<16x128xf32> -> vector<16x128xf32>
    %c1 = arith.constant 1 : index
    %c0_9 = arith.constant 0 : index
    %11 = vector.load %arg7[%c1, %c0_9] : memref<8x128xf32, #tpu.memory_space<vmem>>, vector<1x128xf32>
    %12 = vector.broadcast %11 : vector<1x128xf32> to vector<16x128xf32>
    %13 = arith.addf %10, %12 : vector<16x128xf32>
    %cst_10 = arith.constant 0.000000e+00 : f32
    %14 = vector.broadcast %cst_10 : f32 to vector<16x128xf32>
    %15 = arith.maximumf %13, %14 : vector<16x128xf32>
    %16 = arith.truncf %15 : vector<16x128xf32> to vector<16x128xbf16>
    %c0_11 = arith.constant 0 : index
    %c0_12 = arith.constant 0 : index
    %17 = vector.load %arg4[%c0_11, %c0_12] : memref<128x128xbf16, #tpu.memory_space<vmem>>, vector<128x128xbf16>
    %cst_13 = arith.constant dense<0.000000e+00> : vector<16x128xf32>
    %18 = tpu.matmul %16, %17, %cst_13 {dimension_numbers = #tpu.dot_dimension_numbers<[1], [0], [0], [1], [0, 0, 1, 1], [], []>} : vector<16x128xbf16>, vector<128x128xbf16>, vector<16x128xf32> -> vector<16x128xf32>
    %c2 = arith.constant 2 : index
    %c0_14 = arith.constant 0 : index
    %19 = vector.load %arg7[%c2, %c0_14] : memref<8x128xf32, #tpu.memory_space<vmem>>, vector<1x128xf32>
    %20 = vector.broadcast %19 : vector<1x128xf32> to vector<16x128xf32>
    %21 = arith.addf %18, %20 : vector<16x128xf32>
    %cst_15 = arith.constant 0.000000e+00 : f32
    %22 = vector.broadcast %cst_15 : f32 to vector<16x128xf32>
    %23 = arith.maximumf %21, %22 : vector<16x128xf32>
    %24 = arith.truncf %23 : vector<16x128xf32> to vector<16x128xbf16>
    %c0_16 = arith.constant 0 : index
    %c0_17 = arith.constant 0 : index
    %25 = vector.load %arg5[%c0_16, %c0_17] : memref<128x128xbf16, #tpu.memory_space<vmem>>, vector<128x128xbf16>
    %cst_18 = arith.constant dense<0.000000e+00> : vector<16x128xf32>
    %26 = tpu.matmul %24, %25, %cst_18 {dimension_numbers = #tpu.dot_dimension_numbers<[1], [0], [0], [1], [0, 0, 1, 1], [], []>} : vector<16x128xbf16>, vector<128x128xbf16>, vector<16x128xf32> -> vector<16x128xf32>
    %c3 = arith.constant 3 : index
    %c0_19 = arith.constant 0 : index
    %27 = vector.load %arg7[%c3, %c0_19] : memref<8x128xf32, #tpu.memory_space<vmem>>, vector<1x128xf32>
    %28 = vector.broadcast %27 : vector<1x128xf32> to vector<16x128xf32>
    %29 = arith.addf %26, %28 : vector<16x128xf32>
    %cst_20 = arith.constant 0.000000e+00 : f32
    %30 = vector.broadcast %cst_20 : f32 to vector<16x128xf32>
    %31 = arith.maximumf %29, %30 : vector<16x128xf32>
    %32 = arith.truncf %31 : vector<16x128xf32> to vector<16x128xbf16>
    %c0_21 = arith.constant 0 : index
    %c0_22 = arith.constant 0 : index
    %33 = vector.load %arg6[%c0_21, %c0_22] : memref<128x128xbf16, #tpu.memory_space<vmem>>, vector<128x128xbf16>
    %cst_23 = arith.constant dense<0.000000e+00> : vector<16x128xf32>
    %34 = tpu.matmul %32, %33, %cst_23 {dimension_numbers = #tpu.dot_dimension_numbers<[1], [0], [0], [1], [0, 0, 1, 1], [], []>} : vector<16x128xbf16>, vector<128x128xbf16>, vector<16x128xf32> -> vector<16x128xf32>
    %c4 = arith.constant 4 : index
    %c0_24 = arith.constant 0 : index
    %35 = vector.load %arg7[%c4, %c0_24] : memref<8x128xf32, #tpu.memory_space<vmem>>, vector<1x128xf32>
    %36 = vector.broadcast %35 : vector<1x128xf32> to vector<16x128xf32>
    %37 = arith.addf %34, %36 : vector<16x128xf32>
    %38 = arith.truncf %37 : vector<16x128xf32> to vector<16x128xbf16>
    %c0_25 = arith.constant 0 : index
    %c0_26 = arith.constant 0 : index
    %39 = vector.load %arg8[%c0_25, %c0_26] : memref<16x128xbf16, #tpu.memory_space<vmem>>, vector<16x128xbf16>
    tpu.vector_store %arg8[%c0_25, %c0_26], %38 {strides = array<i32>} : memref<16x128xbf16, #tpu.memory_space<vmem>>, vector<16x128xbf16>,
    return
  }
  func.func @transform_0(%arg0: i32) -> (i32, i32) {
    %c0_i32 = arith.constant 0 : i32
    %c0_i32_0 = arith.constant 0 : i32
    return %arg0, %c0_i32 : i32, i32
  }
  func.func @transform_1(%arg0: i32) -> (i32, i32) {
    %c0_i32 = arith.constant 0 : i32
    %c0_i32_0 = arith.constant 0 : i32
    %c0_i32_1 = arith.constant 0 : i32
    return %c0_i32, %c0_i32_0 : i32, i32
  }
  func.func @transform_2(%arg0: i32) -> (i32, i32) {
    %c0_i32 = arith.constant 0 : i32
    %c0_i32_0 = arith.constant 0 : i32
    %c0_i32_1 = arith.constant 0 : i32
    return %c0_i32, %c0_i32_0 : i32, i32
  }
  func.func @transform_3(%arg0: i32) -> (i32, i32) {
    %c0_i32 = arith.constant 0 : i32
    %c0_i32_0 = arith.constant 0 : i32
    %c0_i32_1 = arith.constant 0 : i32
    return %c0_i32, %c0_i32_0 : i32, i32
  }
  func.func @transform_4(%arg0: i32) -> (i32, i32) {
    %c0_i32 = arith.constant 0 : i32
    %c0_i32_0 = arith.constant 0 : i32
    %c0_i32_1 = arith.constant 0 : i32
    return %c0_i32, %c0_i32_0 : i32, i32
  }
  func.func @transform_5(%arg0: i32) -> (i32, i32) {
    %c0_i32 = arith.constant 0 : i32
    %c0_i32_0 = arith.constant 0 : i32
    %c0_i32_1 = arith.constant 0 : i32
    return %c0_i32, %c0_i32_0 : i32, i32
  }
  func.func @transform_6(%arg0: i32) -> (i32, i32) {
    %c0_i32 = arith.constant 0 : i32
    %c0_i32_0 = arith.constant 0 : i32
    %c0_i32_1 = arith.constant 0 : i32
    return %c0_i32, %c0_i32_0 : i32, i32
  }
  func.func @transform_7(%arg0: i32) -> (i32, i32) {
    %c0_i32 = arith.constant 0 : i32
    %c0_i32_0 = arith.constant 0 : i32
    return %arg0, %c0_i32 : i32, i32
  }
}

</mosaic_0001>

<llo_original>
// kernel: spotify_forward.1
$region0: #{spotify_forward.1}
  #allocation0 [shape = 'u32[]', space=smem, size = 0x4, offset = 0x4, fixed_abs, tag = 'smem constant byte address 0x4 - core index']
  #allocation1 [shape = 'u32[144,128]{1,0:T(1,128)}', space=vmem, size = 0x12000, scoped, tag = 'internal scratch']
  %s0 = inlined_call_operand.vmem [shape: bf16[16,16], index: 0, kind: input, shape index: {}]
  %s1 = inlined_call_operand.vmem [shape: bf16[16,128], index: 1, kind: input, shape index: {}]
  %s2 = inlined_call_operand.hbm [shape: bf16[128,128], index: 2, kind: input, shape index: {}]
  %s3 = inlined_call_operand.hbm [shape: bf16[128,128], index: 3, kind: input, shape index: {}]
  %s4 = inlined_call_operand.hbm [shape: bf16[128,128], index: 4, kind: input, shape index: {}]
  %s5 = inlined_call_operand.hbm [shape: bf16[128,128], index: 5, kind: input, shape index: {}]
  %s6 = inlined_call_operand.vmem [shape: f32[8,128], index: 6, kind: input, shape index: {}]
  %s7 = inlined_call_operand.vmem [shape: bf16[16,128], index: 7, kind: output, shape index: {}]
  %s8 = sld [smem:[#allocation0]]
  $region54: #{spotify_forward.1} parent=0
    _
  %s10 = ssub.s32 1, %s8
  %s11 = scalar_select 0, %s10, %s8
  $region1: #{spotify_forward.1} parent=0
    #allocation2 [shape = 'u8[32768]{0}', space=vmem, size = 0x8000, scoped, tag = 'input window, operand 2, single buffered']
    #allocation3 [shape = 's32[1]{0}', space=sflag, size = 0x4, scoped, tag = 'scoped memory for spotify_forward.1']
    #allocation4 [shape = 'u8[32768]{0}', space=vmem, size = 0x8000, scoped, tag = 'input window, operand 3, single buffered']
    #allocation5 [shape = 's32[1]{0}', space=sflag, size = 0x4, scoped, tag = 'scoped memory for spotify_forward.1']
    #allocation6 [shape = 'u8[32768]{0}', space=vmem, size = 0x8000, scoped, tag = 'input window, operand 4, single buffered']
    #allocation7 [shape = 'u8[32768]{0}', space=vmem, size = 0x8000, scoped, tag = 'input window, operand 5, single buffered']
    #allocation8 [shape = 's32[1]{0}', space=sflag, size = 0x4, scoped, tag = 'scoped memory for spotify_forward.1']
    %12 = vsyncpa [#allocation3], 0
    %13 = vsyncpa [#allocation5], 0
    %14 = vsyncpa [#allocation8], 0
    // Predicated region
    $region2: #{spotify_forward.1} parent=1 // pred_check
      _
    $region3: #{spotify_forward.1} parent=1 // pred_check_branch
      %16 = sbr.rel (0) target = $region5
    $region4: #{spotify_forward.1} parent=1 // pred_region
      _
    $region5: #{spotify_forward.1} parent=1 // pred_fallthru
      _
    // Predicated region
    $region6: #{spotify_forward.1} parent=1 // pred_check
      _
    $region7: #{spotify_forward.1} parent=1 // pred_check_branch
      %18 = sbr.rel (0) target = $region9
    $region8: #{spotify_forward.1} parent=1 // pred_region
      _
    $region9: #{spotify_forward.1} parent=1 // pred_fallthru
      _
    // Predicated region
    $region10: #{spotify_forward.1} parent=1 // pred_check
      _
    $region11: #{spotify_forward.1} parent=1 // pred_check_branch
      %20 = sbr.rel (0) target = $region13
    $region12: #{spotify_forward.1} parent=1 // pred_region
      %s22 = ssub.s32 1024, 1024
      %23 = vsyncadd [#allocation3], %s22
      %s24 = sshll.u32 [#allocation2], 4
      %s25 = int_to_ptr.vmem [resolvable:$true] %s24
      %30 = dma.hbm_to_vmem [thread:$0]  %s2, 1024, %s25, [#allocation3], 64, 64, 4
    $region13: #{spotify_forward.1} parent=1 // pred_fallthru
      _
    // Predicated region
    $region14: #{spotify_forward.1} parent=1 // pred_check
      _
    $region15: #{spotify_forward.1} parent=1 // pred_check_branch
      %32 = sbr.rel (0) target = $region17
    $region16: #{spotify_forward.1} parent=1 // pred_region
      %s34 = ssub.s32 1024, 1024
      %35 = vsyncadd [#allocation5], %s34
      %s36 = sshll.u32 [#allocation4], 4
      %s37 = int_to_ptr.vmem [resolvable:$true] %s36
      %42 = dma.hbm_to_vmem [thread:$0]  %s3, 1024, %s37, [#allocation5], 64, 64, 4
    $region17: #{spotify_forward.1} parent=1 // pred_fallthru
      _
    // Predicated region
    $region18: #{spotify_forward.1} parent=1 // pred_check
      _
    $region19: #{spotify_forward.1} parent=1 // pred_check_branch
      %44 = sbr.rel (0) target = $region21
    $region20: #{spotify_forward.1} parent=1 // pred_region
      %s46 = ssub.s32 1024, 1024
      %47 = vsyncadd [#allocation5], %s46
      %s48 = sshll.u32 [#allocation6], 4
      %s49 = int_to_ptr.vmem [resolvable:$true] %s48
      %54 = dma.hbm_to_vmem [thread:$0]  %s4, 1024, %s49, [#allocation5], 64, 64, 4
    $region21: #{spotify_forward.1} parent=1 // pred_fallthru
      _
    // Predicated region
    $region22: #{spotify_forward.1} parent=1 // pred_check
      _
    $region23: #{spotify_forward.1} parent=1 // pred_check_branch
      %56 = sbr.rel (0) target = $region25
    $region24: #{spotify_forward.1} parent=1 // pred_region
      %s58 = ssub.s32 1024, 1024
      %59 = vsyncadd [#allocation8], %s58
      %s60 = sshll.u32 [#allocation7], 4
      %s61 = int_to_ptr.vmem [resolvable:$true] %s60
      %66 = dma.hbm_to_vmem [thread:$0]  %s5, 1024, %s61, [#allocation8], 64, 64, 4
    $region25: #{spotify_forward.1} parent=1 // pred_fallthru
      _
    // Predicated region
    $region26: #{spotify_forward.1} parent=1 // pred_check
      _
    $region27: #{spotify_forward.1} parent=1 // pred_check_branch
      %68 = sbr.rel (0) target = $region29
    $region28: #{spotify_forward.1} parent=1 // pred_region
      _
    $region29: #{spotify_forward.1} parent=1 // pred_fallthru
      _
    // Predicated region
    $region30: #{spotify_forward.1} parent=1 // pred_check
      _
    $region31: #{spotify_forward.1} parent=1 // pred_check_branch
      %70 = sbr.rel (0) target = $region33
    $region32: #{spotify_forward.1} parent=1 // pred_region
      %71 = dma.done [#allocation3], 1024
    $region33: #{spotify_forward.1} parent=1 // pred_fallthru
      _
    // Predicated region
    $region34: #{spotify_forward.1} parent=1 // pred_check
      _
    $region35: #{spotify_forward.1} parent=1 // pred_check_branch
      %73 = sbr.rel (0) target = $region37
    $region36: #{spotify_forward.1} parent=1 // pred_region
      %74 = dma.done [#allocation5], 1024
    $region37: #{spotify_forward.1} parent=1 // pred_fallthru
      _
    // Predicated region
    $region38: #{spotify_forward.1} parent=1 // pred_check
      _
    $region39: #{spotify_forward.1} parent=1 // pred_check_branch
      %76 = sbr.rel (0) target = $region41
    $region40: #{spotify_forward.1} parent=1 // pred_region
      %77 = dma.done [#allocation5], 1024
    $region41: #{spotify_forward.1} parent=1 // pred_fallthru
      _
    // Predicated region
    $region42: #{spotify_forward.1} parent=1 // pred_check
      _
    $region43: #{spotify_forward.1} parent=1 // pred_check_branch
      %79 = sbr.rel (0) target = $region45
    $region44: #{spotify_forward.1} parent=1 // pred_region
      %80 = dma.done [#allocation8], 1024
    $region45: #{spotify_forward.1} parent=1 // pred_fallthru
      _
    %v82 = vld [vmem:[%s0] sm:$0xf]
    %v83 = vld [vmem:[%s0 + $0x4] sm:$0xf]
    %v84 = vld [vmem:[%s1] sm:$0xf]
    %v85 = vld [vmem:[%s1 + $0x4] sm:$0xf]
    %v86 = vld [vmem:[%s6] sm:$0x1]
    %v87 = vlaneseq
    %v88 = vshrl.u32 %v87, 7
    %v89 = vsub.s32 0, %v88
    %v90 = vrot.slane %v86, %v89
    %v93 = vunpack.c.l.b16 %v82
    %v94 = vunpack.c.l.b16 %v83
    %v95 = vpack.c.b16 %v94, %v93
    %v98 = vunpack.c.l.b16 %v84
    %v99 = vunpack.c.l.b16 %v85
    %v100 = vpack.c.b16 %v99, %v98
    %vm102 = vcmask 130048
    %v104 = vsel %vm102, %v95, 0
    %106 = vmatprep.subr.bf16.mxu0 0
    %107 = vmatpush1.bf16.msra.mxu0 %v100
    %108 = vmatprep.subr.bf16.mxu0 0
    %109 = vmatpush1.bf16.msra.mxu0 0
    %110 = vmatprep.subr.bf16.mxu0 0
    %111 = vmatpush1.bf16.msra.mxu0 0
    %112 = vmatprep.subr.bf16.mxu0 0
    %113 = vmatpush1.bf16.msra.mxu0 0
    %114 = vmatprep.subr.bf16.mxu0 0
    %115 = vmatpush1.bf16.msra.mxu0 0
    %116 = vmatprep.subr.bf16.mxu0 0
    %117 = vmatpush1.bf16.msra.mxu0 0
    %118 = vmatprep.subr.bf16.mxu0 0
    %119 = vmatpush1.bf16.msra.mxu0 0
    %120 = vmatprep.subr.bf16.mxu0 0
    %121 = vmatpush1.bf16.msra.mxu0 0
    %122 = vmatprep.subr.bf16.mxu0 0
    %123 = vmatpush1.bf16.msra.mxu0 0
    %124 = vmatprep.subr.bf16.mxu0 0
    %125 = vmatpush1.bf16.msra.mxu0 0
    %126 = vmatprep.subr.bf16.mxu0 0
    %127 = vmatpush1.bf16.msra.mxu0 0
    %128 = vmatprep.subr.bf16.mxu0 0
    %129 = vmatpush1.bf16.msra.mxu0 0
    %130 = vmatprep.subr.bf16.mxu0 0
    %131 = vmatpush1.bf16.msra.mxu0 0
    %132 = vmatprep.subr.bf16.mxu0 0
    %133 = vmatpush1.bf16.msra.mxu0 0
    %134 = vmatprep.subr.bf16.mxu0 0
    %135 = vmatpush1.bf16.msra.mxu0 0
    %136 = vmatprep.subr.bf16.mxu0 0
    %137 = vmatpush1.bf16.msra.mxu0 0
    %138 = vmatprep.mubr.bf16.mxu0 0
    %139 = vmatmul.mubr.bf16.gmra.mrb[0].mxu0 %v104
    %v140 = vpop.f32.mrb[0].mxu0
    %v141 = vadd.f32 %v90, %v140
    %v142 = vpop.f32.mrb[0].mxu0
    %v143 = vpop.f32.mrb[0].mxu0
    %v144 = vadd.f32 %v90, %v143
    %v145 = vpop.f32.mrb[0].mxu0
    %146 = vdwg.mxu0
    %v147 = vmax.f32 %v141, 0.0
    %v148 = vmax.f32 %v144, 0.0
    %v149 = vpack.c.bf16 %v148, %v147
    %v150 = vld [vmem:[#allocation2] sm:$0xf]
    %v151 = vld [vmem:[#allocation2 + $0x4] sm:$0xf]
    %v152 = vld [vmem:[#allocation2 + $0x8] sm:$0xf]
    %v153 = vld [vmem:[#allocation2 + $0xc] sm:$0xf]
    %v154 = vld [vmem:[#allocation2 + $0x10] sm:$0xf]
    %v155 = vld [vmem:[#allocation2 + $0x14] sm:$0xf]
    %v156 = vld [vmem:[#allocation2 + $0x18] sm:$0xf]
    %v157 = vld [vmem:[#allocation2 + $0x1c] sm:$0xf]
    %v158 = vld [vmem:[#allocation2 + $0x20] sm:$0xf]
    %v159 = vld [vmem:[#allocation2 + $0x24] sm:$0xf]
    %v160 = vld [vmem:[#allocation2 + $0x28] sm:$0xf]
    %v161 = vld [vmem:[#allocation2 + $0x2c] sm:$0xf]
    %v162 = vld [vmem:[#allocation2 + $0x30] sm:$0xf]
    %v163 = vld [vmem:[#allocation2 + $0x34] sm:$0xf]
    %v164 = vld [vmem:[#allocation2 + $0x38] sm:$0xf]
    %v165 = vld [vmem:[#allocation2 + $0x3c] sm:$0xf]
    %v166 = vld [vmem:[%s6 + $0x1] sm:$0x1]
    %v167 = vlaneseq
    %v168 = vshrl.u32 %v167, 7
    %v169 = vsub.s32 0, %v168
    %v170 = vrot.slane %v166, %v169
    %v187 = vunpack.c.l.b16 %v150
    %v188 = vunpack.c.l.b16 %v151
    %v189 = vunpack.c.l.b16 %v152
    %v190 = vunpack.c.l.b16 %v153
    %v191 = vunpack.c.l.b16 %v154
    %v192 = vunpack.c.l.b16 %v155
    %v193 = vunpack.c.l.b16 %v156
    %v194 = vunpack.c.l.b16 %v157
    %v195 = vunpack.c.l.b16 %v158
    %v196 = vunpack.c.l.b16 %v159
    %v197 = vunpack.c.l.b16 %v160
    %v198 = vunpack.c.l.b16 %v161
    %v199 = vunpack.c.l.b16 %v162
    %v200 = vunpack.c.l.b16 %v163
    %v201 = vunpack.c.l.b16 %v164
    %v202 = vunpack.c.l.b16 %v165
    %v203 = vpack.c.b16 %v188, %v187
    %v204 = vpack.c.b16 %v190, %v189
    %v205 = vpack.c.b16 %v192, %v191
    %v206 = vpack.c.b16 %v194, %v193
    %v207 = vpack.c.b16 %v196, %v195
    %v208 = vpack.c.b16 %v198, %v197
    %v209 = vpack.c.b16 %v200, %v199
    %v210 = vpack.c.b16 %v202, %v201
    %219 = vmatprep.subr.bf16.mxu0 0
    %220 = vmatpush1.bf16.msra.mxu0 %v203
    %221 = vmatprep.subr.bf16.mxu0 0
    %222 = vmatpush1.bf16.msra.mxu0 %v204
    %223 = vmatprep.subr.bf16.mxu0 0
    %224 = vmatpush1.bf16.msra.mxu0 %v205
    %225 = vmatprep.subr.bf16.mxu0 0
    %226 = vmatpush1.bf16.msra.mxu0 %v206
    %227 = vmatprep.subr.bf16.mxu0 0
    %228 = vmatpush1.bf16.msra.mxu0 %v207
    %229 = vmatprep.subr.bf16.mxu0 0
    %230 = vmatpush1.bf16.msra.mxu0 %v208
    %231 = vmatprep.subr.bf16.mxu0 0
    %232 = vmatpush1.bf16.msra.mxu0 %v209
    %233 = vmatprep.subr.bf16.mxu0 0
    %234 = vmatpush1.bf16.msra.mxu0 %v210
    %235 = vmatprep.subr.bf16.mxu0 0
    %236 = vmatpush1.bf16.msra.mxu0 0
    %237 = vmatprep.subr.bf16.mxu0 0
    %238 = vmatpush1.bf16.msra.mxu0 0
    %239 = vmatprep.subr.bf16.mxu0 0
    %240 = vmatpush1.bf16.msra.mxu0 0
    %241 = vmatprep.subr.bf16.mxu0 0
    %242 = vmatpush1.bf16.msra.mxu0 0
    %243 = vmatprep.subr.bf16.mxu0 0
    %244 = vmatpush1.bf16.msra.mxu0 0
    %245 = vmatprep.subr.bf16.mxu0 0
    %246 = vmatpush1.bf16.msra.mxu0 0
    %247 = vmatprep.subr.bf16.mxu0 0
    %248 = vmatpush1.bf16.msra.mxu0 0
    %249 = vmatprep.subr.bf16.mxu0 0
    %250 = vmatpush1.bf16.msra.mxu0 0
    %251 = vmatprep.mubr.bf16.mxu0 0
    %252 = vmatmul.mubr.bf16.gmra.mrb[0].mxu0 %v149
    %v253 = vpop.f32.mrb[0].mxu0
    %v254 = vadd.f32 %v170, %v253
    %v255 = vpop.f32.mrb[0].mxu0
    %v256 = vpop.f32.mrb[0].mxu0
    %v257 = vadd.f32 %v170, %v256
    %v258 = vpop.f32.mrb[0].mxu0
    %259 = vdwg.mxu0
    %v260 = vmax.f32 %v254, 0.0
    %v261 = vmax.f32 %v257, 0.0
    %v262 = vpack.c.bf16 %v261, %v260
    %v263 = vld [vmem:[#allocation4] sm:$0xf]
    %v264 = vld [vmem:[#allocation4 + $0x4] sm:$0xf]
    %v265 = vld [vmem:[#allocation4 + $0x8] sm:$0xf]
    %v266 = vld [vmem:[#allocation4 + $0xc] sm:$0xf]
    %v267 = vld [vmem:[#allocation4 + $0x10] sm:$0xf]
    %v268 = vld [vmem:[#allocation4 + $0x14] sm:$0xf]
    %v269 = vld [vmem:[#allocation4 + $0x18] sm:$0xf]
    %v270 = vld [vmem:[#allocation4 + $0x1c] sm:$0xf]
    %v271 = vld [vmem:[#allocation4 + $0x20] sm:$0xf]
    %v272 = vld [vmem:[#allocation4 + $0x24] sm:$0xf]
    %v273 = vld [vmem:[#allocation4 + $0x28] sm:$0xf]
    %v274 = vld [vmem:[#allocation4 + $0x2c] sm:$0xf]
    %v275 = vld [vmem:[#allocation4 + $0x30] sm:$0xf]
    %v276 = vld [vmem:[#allocation4 + $0x34] sm:$0xf]
    %v277 = vld [vmem:[#allocation4 + $0x38] sm:$0xf]
    %v278 = vld [vmem:[#allocation4 + $0x3c] sm:$0xf]
    %v279 = vld [vmem:[%s6 + $0x2] sm:$0x1]
    %v280 = vlaneseq
    %v281 = vshrl.u32 %v280, 7
    %v282 = vsub.s32 0, %v281
    %v283 = vrot.slane %v279, %v282
    %v300 = vunpack.c.l.b16 %v263
    %v301 = vunpack.c.l.b16 %v264
    %v302 = vunpack.c.l.b16 %v265
    %v303 = vunpack.c.l.b16 %v266
    %v304 = vunpack.c.l.b16 %v267
    %v305 = vunpack.c.l.b16 %v268
    %v306 = vunpack.c.l.b16 %v269
    %v307 = vunpack.c.l.b16 %v270
    %v308 = vunpack.c.l.b16 %v271
    %v309 = vunpack.c.l.b16 %v272
    %v310 = vunpack.c.l.b16 %v273
    %v311 = vunpack.c.l.b16 %v274
    %v312 = vunpack.c.l.b16 %v275
    %v313 = vunpack.c.l.b16 %v276
    %v314 = vunpack.c.l.b16 %v277
    %v315 = vunpack.c.l.b16 %v278
    %v316 = vpack.c.b16 %v301, %v300
    %v317 = vpack.c.b16 %v303, %v302
    %v318 = vpack.c.b16 %v305, %v304
    %v319 = vpack.c.b16 %v307, %v306
    %v320 = vpack.c.b16 %v309, %v308
    %v321 = vpack.c.b16 %v311, %v310
    %v322 = vpack.c.b16 %v313, %v312
    %v323 = vpack.c.b16 %v315, %v314
    %332 = vmatprep.subr.bf16.mxu0 0
    %333 = vmatpush1.bf16.msra.mxu0 %v316
    %334 = vmatprep.subr.bf16.mxu0 0
    %335 = vmatpush1.bf16.msra.mxu0 %v317
    %336 = vmatprep.subr.bf16.mxu0 0
    %337 = vmatpush1.bf16.msra.mxu0 %v318
    %338 = vmatprep.subr.bf16.mxu0 0
    %339 = vmatpush1.bf16.msra.mxu0 %v319
    %340 = vmatprep.subr.bf16.mxu0 0
    %341 = vmatpush1.bf16.msra.mxu0 %v320
    %342 = vmatprep.subr.bf16.mxu0 0
    %343 = vmatpush1.bf16.msra.mxu0 %v321
    %344 = vmatprep.subr.bf16.mxu0 0
    %345 = vmatpush1.bf16.msra.mxu0 %v322
    %346 = vmatprep.subr.bf16.mxu0 0
    %347 = vmatpush1.bf16.msra.mxu0 %v323
    %348 = vmatprep.subr.bf16.mxu0 0
    %349 = vmatpush1.bf16.msra.mxu0 0
    %350 = vmatprep.subr.bf16.mxu0 0
    %351 = vmatpush1.bf16.msra.mxu0 0
    %352 = vmatprep.subr.bf16.mxu0 0
    %353 = vmatpush1.bf16.msra.mxu0 0
    %354 = vmatprep.subr.bf16.mxu0 0
    %355 = vmatpush1.bf16.msra.mxu0 0
    %356 = vmatprep.subr.bf16.mxu0 0
    %357 = vmatpush1.bf16.msra.mxu0 0
    %358 = vmatprep.subr.bf16.mxu0 0
    %359 = vmatpush1.bf16.msra.mxu0 0
    %360 = vmatprep.subr.bf16.mxu0 0
    %361 = vmatpush1.bf16.msra.mxu0 0
    %362 = vmatprep.subr.bf16.mxu0 0
    %363 = vmatpush1.bf16.msra.mxu0 0
    %364 = vmatprep.mubr.bf16.mxu0 0
    %365 = vmatmul.mubr.bf16.gmra.mrb[0].mxu0 %v262
    %v366 = vpop.f32.mrb[0].mxu0
    %v367 = vadd.f32 %v283, %v366
    %v368 = vpop.f32.mrb[0].mxu0
    %v369 = vpop.f32.mrb[0].mxu0
    %v370 = vadd.f32 %v283, %v369
    %v371 = vpop.f32.mrb[0].mxu0
    %372 = vdwg.mxu0
    %v373 = vmax.f32 %v367, 0.0
    %v374 = vmax.f32 %v370, 0.0
    %v375 = vpack.c.bf16 %v374, %v373
    %v376 = vld [vmem:[#allocation6] sm:$0xf]
    %v377 = vld [vmem:[#allocation6 + $0x4] sm:$0xf]
    %v378 = vld [vmem:[#allocation6 + $0x8] sm:$0xf]
    %v379 = vld [vmem:[#allocation6 + $0xc] sm:$0xf]
    %v380 = vld [vmem:[#allocation6 + $0x10] sm:$0xf]
    %v381 = vld [vmem:[#allocation6 + $0x14] sm:$0xf]
    %v382 = vld [vmem:[#allocation6 + $0x18] sm:$0xf]
    %v383 = vld [vmem:[#allocation6 + $0x1c] sm:$0xf]
    %v384 = vld [vmem:[#allocation6 + $0x20] sm:$0xf]
    %v385 = vld [vmem:[#allocation6 + $0x24] sm:$0xf]
    %v386 = vld [vmem:[#allocation6 + $0x28] sm:$0xf]
    %v387 = vld [vmem:[#allocation6 + $0x2c] sm:$0xf]
    %v388 = vld [vmem:[#allocation6 + $0x30] sm:$0xf]
    %v389 = vld [vmem:[#allocation6 + $0x34] sm:$0xf]
    %v390 = vld [vmem:[#allocation6 + $0x38] sm:$0xf]
    %v391 = vld [vmem:[#allocation6 + $0x3c] sm:$0xf]
    %v392 = vld [vmem:[%s6 + $0x3] sm:$0x1]
    %v393 = vlaneseq
    %v394 = vshrl.u32 %v393, 7
    %v395 = vsub.s32 0, %v394
    %v396 = vrot.slane %v392, %v395
    %v413 = vunpack.c.l.b16 %v376
    %v414 = vunpack.c.l.b16 %v377
    %v415 = vunpack.c.l.b16 %v378
    %v416 = vunpack.c.l.b16 %v379
    %v417 = vunpack.c.l.b16 %v380
    %v418 = vunpack.c.l.b16 %v381
    %v419 = vunpack.c.l.b16 %v382
    %v420 = vunpack.c.l.b16 %v383
    %v421 = vunpack.c.l.b16 %v384
    %v422 = vunpack.c.l.b16 %v385
    %v423 = vunpack.c.l.b16 %v386
    %v424 = vunpack.c.l.b16 %v387
    %v425 = vunpack.c.l.b16 %v388
    %v426 = vunpack.c.l.b16 %v389
    %v427 = vunpack.c.l.b16 %v390
    %v428 = vunpack.c.l.b16 %v391
    %v429 = vpack.c.b16 %v414, %v413
    %v430 = vpack.c.b16 %v416, %v415
    %v431 = vpack.c.b16 %v418, %v417
    %v432 = vpack.c.b16 %v420, %v419
    %v433 = vpack.c.b16 %v422, %v421
    %v434 = vpack.c.b16 %v424, %v423
    %v435 = vpack.c.b16 %v426, %v425
    %v436 = vpack.c.b16 %v428, %v427
    %445 = vmatprep.subr.bf16.mxu0 0
    %446 = vmatpush1.bf16.msra.mxu0 %v429
    %447 = vmatprep.subr.bf16.mxu0 0
    %448 = vmatpush1.bf16.msra.mxu0 %v430
    %449 = vmatprep.subr.bf16.mxu0 0
    %450 = vmatpush1.bf16.msra.mxu0 %v431
    %451 = vmatprep.subr.bf16.mxu0 0
    %452 = vmatpush1.bf16.msra.mxu0 %v432
    %453 = vmatprep.subr.bf16.mxu0 0
    %454 = vmatpush1.bf16.msra.mxu0 %v433
    %455 = vmatprep.subr.bf16.mxu0 0
    %456 = vmatpush1.bf16.msra.mxu0 %v434
    %457 = vmatprep.subr.bf16.mxu0 0
    %458 = vmatpush1.bf16.msra.mxu0 %v435
    %459 = vmatprep.subr.bf16.mxu0 0
    %460 = vmatpush1.bf16.msra.mxu0 %v436
    %461 = vmatprep.subr.bf16.mxu0 0
    %462 = vmatpush1.bf16.msra.mxu0 0
    %463 = vmatprep.subr.bf16.mxu0 0
    %464 = vmatpush1.bf16.msra.mxu0 0
    %465 = vmatprep.subr.bf16.mxu0 0
    %466 = vmatpush1.bf16.msra.mxu0 0
    %467 = vmatprep.subr.bf16.mxu0 0
    %468 = vmatpush1.bf16.msra.mxu0 0
    %469 = vmatprep.subr.bf16.mxu0 0
    %470 = vmatpush1.bf16.msra.mxu0 0
    %471 = vmatprep.subr.bf16.mxu0 0
    %472 = vmatpush1.bf16.msra.mxu0 0
    %473 = vmatprep.subr.bf16.mxu0 0
    %474 = vmatpush1.bf16.msra.mxu0 0
    %475 = vmatprep.subr.bf16.mxu0 0
    %476 = vmatpush1.bf16.msra.mxu0 0
    %477 = vmatprep.mubr.bf16.mxu0 0
    %478 = vmatmul.mubr.bf16.gmra.mrb[0].mxu0 %v375
    %v479 = vpop.f32.mrb[0].mxu0
    %v480 = vadd.f32 %v396, %v479
    %v481 = vpop.f32.mrb[0].mxu0
    %v482 = vpop.f32.mrb[0].mxu0
    %v483 = vadd.f32 %v396, %v482
    %v484 = vpop.f32.mrb[0].mxu0
    %485 = vdwg.mxu0
    %v486 = vmax.f32 %v480, 0.0
    %v487 = vmax.f32 %v483, 0.0
    %v488 = vpack.c.bf16 %v487, %v486
    %v489 = vld [vmem:[#allocation7] sm:$0xf]
    %v490 = vld [vmem:[#allocation7 + $0x4] sm:$0xf]
    %v491 = vld [vmem:[#allocation7 + $0x8] sm:$0xf]
    %v492 = vld [vmem:[#allocation7 + $0xc] sm:$0xf]
    %v493 = vld [vmem:[#allocation7 + $0x10] sm:$0xf]
    %v494 = vld [vmem:[#allocation7 + $0x14] sm:$0xf]
    %v495 = vld [vmem:[#allocation7 + $0x18] sm:$0xf]
    %v496 = vld [vmem:[#allocation7 + $0x1c] sm:$0xf]
    %v497 = vld [vmem:[#allocation7 + $0x20] sm:$0xf]
    %v498 = vld [vmem:[#allocation7 + $0x24] sm:$0xf]
    %v499 = vld [vmem:[#allocation7 + $0x28] sm:$0xf]
    %v500 = vld [vmem:[#allocation7 + $0x2c] sm:$0xf]
    %v501 = vld [vmem:[#allocation7 + $0x30] sm:$0xf]
    %v502 = vld [vmem:[#allocation7 + $0x34] sm:$0xf]
    %v503 = vld [vmem:[#allocation7 + $0x38] sm:$0xf]
    %v504 = vld [vmem:[#allocation7 + $0x3c] sm:$0xf]
    %v505 = vld [vmem:[%s6 + $0x4] sm:$0x1]
    %v506 = vlaneseq
    %v507 = vshrl.u32 %v506, 7
    %v508 = vsub.s32 0, %v507
    %v509 = vrot.slane %v505, %v508
    %v526 = vunpack.c.l.b16 %v489
    %v527 = vunpack.c.l.b16 %v490
    %v528 = vunpack.c.l.b16 %v491
    %v529 = vunpack.c.l.b16 %v492
    %v530 = vunpack.c.l.b16 %v493
    %v531 = vunpack.c.l.b16 %v494
    %v532 = vunpack.c.l.b16 %v495
    %v533 = vunpack.c.l.b16 %v496
    %v534 = vunpack.c.l.b16 %v497
    %v535 = vunpack.c.l.b16 %v498
    %v536 = vunpack.c.l.b16 %v499
    %v537 = vunpack.c.l.b16 %v500
    %v538 = vunpack.c.l.b16 %v501
    %v539 = vunpack.c.l.b16 %v502
    %v540 = vunpack.c.l.b16 %v503
    %v541 = vunpack.c.l.b16 %v504
    %v542 = vpack.c.b16 %v527, %v526
    %v543 = vpack.c.b16 %v529, %v528
    %v544 = vpack.c.b16 %v531, %v530
    %v545 = vpack.c.b16 %v533, %v532
    %v546 = vpack.c.b16 %v535, %v534
    %v547 = vpack.c.b16 %v537, %v536
    %v548 = vpack.c.b16 %v539, %v538
    %v549 = vpack.c.b16 %v541, %v540
    %558 = vmatprep.subr.bf16.mxu0 0
    %559 = vmatpush1.bf16.msra.mxu0 %v542
    %560 = vmatprep.subr.bf16.mxu0 0
    %561 = vmatpush1.bf16.msra.mxu0 %v543
    %562 = vmatprep.subr.bf16.mxu0 0
    %563 = vmatpush1.bf16.msra.mxu0 %v544
    %564 = vmatprep.subr.bf16.mxu0 0
    %565 = vmatpush1.bf16.msra.mxu0 %v545
    %566 = vmatprep.subr.bf16.mxu0 0
    %567 = vmatpush1.bf16.msra.mxu0 %v546
    %568 = vmatprep.subr.bf16.mxu0 0
    %569 = vmatpush1.bf16.msra.mxu0 %v547
    %570 = vmatprep.subr.bf16.mxu0 0
    %571 = vmatpush1.bf16.msra.mxu0 %v548
    %572 = vmatprep.subr.bf16.mxu0 0
    %573 = vmatpush1.bf16.msra.mxu0 %v549
    %574 = vmatprep.subr.bf16.mxu0 0
    %575 = vmatpush1.bf16.msra.mxu0 0
    %576 = vmatprep.subr.bf16.mxu0 0
    %577 = vmatpush1.bf16.msra.mxu0 0
    %578 = vmatprep.subr.bf16.mxu0 0
    %579 = vmatpush1.bf16.msra.mxu0 0
    %580 = vmatprep.subr.bf16.mxu0 0
    %581 = vmatpush1.bf16.msra.mxu0 0
    %582 = vmatprep.subr.bf16.mxu0 0
    %583 = vmatpush1.bf16.msra.mxu0 0
    %584 = vmatprep.subr.bf16.mxu0 0
    %585 = vmatpush1.bf16.msra.mxu0 0
    %586 = vmatprep.subr.bf16.mxu0 0
    %587 = vmatpush1.bf16.msra.mxu0 0
    %588 = vmatprep.subr.bf16.mxu0 0
    %589 = vmatpush1.bf16.msra.mxu0 0
    %590 = vmatprep.mubr.bf16.mxu0 0
    %591 = vmatmul.mubr.bf16.gmra.mrb[0].mxu0 %v488
    %v592 = vpop.f32.mrb[0].mxu0
    %v593 = vadd.f32 %v509, %v592
    %v594 = vpop.f32.mrb[0].mxu0
    %v595 = vpop.f32.mrb[0].mxu0
    %v596 = vadd.f32 %v509, %v595
    %v597 = vpop.f32.mrb[0].mxu0
    %598 = vdwg.mxu0
    %v599 = vpack.c.bf16 %v596, %v593
    %v601 = vunpack.c.l.b16 %v599
    %v602 = vunpack.c.h.b16 %v599
    %v603 = vpack.c.b16 %v601, %v601
    %v604 = vpack.c.b16 %v602, %v602
    %607 = vst [vmem:[%s7] sm:$0xf] %v603
    %608 = vst [vmem:[%s7 + $0x4] sm:$0xf] %v604
    // Predicated region
    $region46: #{spotify_forward.1} parent=1 // pred_check
      _
    $region47: #{spotify_forward.1} parent=1 // pred_check_branch
      %610 = sbr.rel (0) target = $region49
    $region48: #{spotify_forward.1} parent=1 // pred_region
      _
    $region49: #{spotify_forward.1} parent=1 // pred_fallthru
      _
    // Predicated region
    $region50: #{spotify_forward.1} parent=1 // pred_check
      _
    $region51: #{spotify_forward.1} parent=1 // pred_check_branch
      %612 = sbr.rel (0) target = $region53
    $region52: #{spotify_forward.1} parent=1 // pred_region
      _
    $region53: #{spotify_forward.1} parent=1 // pred_fallthru
      _
    %613 = vsyncpa [#allocation3], 1
    %614 = vsyncpa [#allocation5], 1
    %615 = vsyncpa [#allocation8], 1

</llo_original>
